<compile_context>
chip_gen: v7x
topology: tpu7x:2x2x1
jax: 0.10.0
libtpu: 0.0.40
codegen_flags: <defaults>
</compile_context>

<pallas_src>
import functools

import jax
import jax.numpy as jnp
from jax.experimental import pallas as pl
from jax.experimental.pallas import tpu as pltpu

THRESHOLD = 1.0


def snn_kernel(x_ref, w1_ref, b1_ref, w2_ref, b2_ref,
               spk_rec_ref, mem_rec_ref, *, num_steps, beta):
    """Whole SNN forward (all time steps) in one kernel invocation."""
    B = x_ref.shape[0]
    n_out = w2_ref.shape[1]

    # Hoisted scalar constants (avoid re-materializing splats per unrolled step).
    beta_v = jnp.float32(beta)
    thr = jnp.float32(THRESHOLD)

    x = x_ref[...]
    w1 = w1_ref[...]
    b1 = b1_ref[...]
    w2 = w2_ref[...]
    b2 = b2_ref[...]

    # fc1(x) is loop-invariant -> computed once. f32 MXU; K=16 so cost is noise.
    cur1 = jnp.dot(x, w1, preferred_element_type=jnp.float32) + b1

    # ---- Phase 1: layer-1 LIF recurrence for all steps (VPU only). ----
    mem1 = jnp.zeros_like(cur1)
    spk1_steps = []
    for _ in range(num_steps):
        mem1 = beta_v * mem1 + cur1
        fired1 = mem1 > thr
        spk1_steps.append(fired1.astype(jnp.float32))
        mem1 = jnp.where(fired1, mem1 - thr, mem1)      # reset by subtraction

    # ---- Phase 2: ONE batched fc2 over all steps (off the serial chain). ----
    spk1_all = jnp.concatenate(spk1_steps, axis=0)       # (T*B, n_hid)
    cur2_all = jnp.dot(spk1_all, w2, preferred_element_type=jnp.float32) + b2

    # Re-pack per-step currents lane-dense: step t -> (1, B*n_out), built from
    # static sublane slices + lane concats (no in-kernel reshape needed).
    cur2_rows = [
        jnp.concatenate(
            [cur2_all[t * B + b: t * B + b + 1, :] for b in range(B)], axis=1)
        for t in range(num_steps)
    ]

    # ---- Phase 3: layer-2 LIF recurrence (VPU only, lane-dense state). ----
    mem2 = jnp.zeros((1, B * n_out), jnp.float32)
    spk2_rows, mem2_rows = [], []
    for t in range(num_steps):
        mem2 = beta_v * mem2 + cur2_rows[t]
        fired2 = mem2 > thr
        spk2_rows.append(fired2.astype(jnp.float32))
        mem2 = jnp.where(fired2, mem2 - thr, mem2)
        mem2_rows.append(mem2)

    # Single lane-dense writeback per output at kernel end.
    spk_rec_ref[...] = jnp.concatenate(spk2_rows, axis=0)   # (T, B*n_out)
    mem_rec_ref[...] = jnp.concatenate(mem2_rows, axis=0)   # (T, B*n_out)


def snn_forward(x, w1, b1, w2, b2, *, num_steps, beta):
    B = x.shape[0]
    n_out = w2.shape[1]

    kernel = functools.partial(snn_kernel, num_steps=num_steps, beta=beta)
    out_shape = (
        jax.ShapeDtypeStruct((num_steps, B * n_out), jnp.float32),  # spk2_rec
        jax.ShapeDtypeStruct((num_steps, B * n_out), jnp.float32),  # mem2_rec
    )
    vmem = pl.BlockSpec(memory_space=pltpu.MemorySpace.VMEM)

    spk_flat, mem_flat = pl.pallas_call(
        kernel,
        out_shape=out_shape,
        # No grid: single invocation; every operand is a whole-array VMEM block
        # (loop-invariant weights resident once, nothing to pipeline).
        in_specs=[vmem] * 5,
        out_specs=(vmem, vmem),
        compiler_params=pltpu.CompilerParams(
            # Footprint is KiB-scale; 16 MiB leaves ample headroom everywhere
            # (v7x physical VMEM is 64 MiB, v5e/v6e 128 MiB).
            vmem_limit_bytes=16 * 1024 * 1024,
        ),
    )(x, w1, b1, w2, b2)

    # Wrapper-side reshape back to the PyTorch return layout (layout plumbing).
    return (spk_flat.reshape(num_steps, B, n_out),
            mem_flat.reshape(num_steps, B, n_out))


def snn_reference(x, w1, b1, w2, b2, *, num_steps, beta):
    """Pure-JAX reference with identical (assumed) LIF semantics."""
    beta_v = jnp.float32(beta)
    thr = jnp.float32(THRESHOLD)
    cur1 = jnp.dot(x, w1, preferred_element_type=jnp.float32) + b1
    mem1 = jnp.zeros_like(cur1)
    mem2 = jnp.zeros((x.shape[0], w2.shape[1]), jnp.float32)
    spk2_rec, mem2_rec = [], []
    for _ in range(num_steps):
        mem1 = beta_v * mem1 + cur1
        fired1 = mem1 > thr
        spk1 = fired1.astype(jnp.float32)
        mem1 = jnp.where(fired1, mem1 - thr, mem1)
        cur2 = jnp.dot(spk1, w2, preferred_element_type=jnp.float32) + b2
        mem2 = beta_v * mem2 + cur2
        fired2 = mem2 > thr
        spk2_rec.append(fired2.astype(jnp.float32))
        mem2 = jnp.where(fired2, mem2 - thr, mem2)
        mem2_rec.append(mem2)
    return jnp.stack(spk2_rec), jnp.stack(mem2_rec)


def init_linear(key, fan_in, fan_out):
    """PyTorch-style nn.Linear init; weight pre-transposed to (fan_in, fan_out)."""
    kw, kb = jax.random.split(key)
    bound = 1.0 / jnp.sqrt(fan_in)
    w = jax.random.uniform(kw, (fan_in, fan_out), jnp.float32, -bound, bound)
    b = jax.random.uniform(kb, (1, fan_out), jnp.float32, -bound, bound)
    return w, b


if __name__ == "__main__":
    # small shapes consistent with Net(num_inputs, num_hidden, num_outputs, num_steps, beta)
    batch = 2
    num_inputs = 16     # perfect square, matching generate_square_grid_ascending usage
    num_hidden = 32
    num_outputs = 8
    num_steps = 8
    beta = 0.95

    key = jax.random.PRNGKey(0)
    kx, k1, k2 = jax.random.split(key, 3)

    x = jax.random.uniform(kx, (batch, num_inputs), jnp.float32)
    w1, b1 = init_linear(k1, num_inputs, num_hidden)
    w2, b2 = init_linear(k2, num_hidden, num_outputs)

    spk2_rec, mem2_rec = snn_forward(x, w1, b1, w2, b2,
                                     num_steps=num_steps, beta=beta)
    jax.block_until_ready((spk2_rec, mem2_rec))

    assert spk2_rec.shape == (num_steps, batch, num_outputs)
    assert mem2_rec.shape == (num_steps, batch, num_outputs)
    assert bool(jnp.all(jnp.isfinite(mem2_rec)))

    # Correctness vs pure-JAX reference (same assumed LIF semantics, f32 path).
    spk_ref, mem_ref = snn_reference(x, w1, b1, w2, b2,
                                     num_steps=num_steps, beta=beta)
    assert bool(jnp.allclose(spk2_rec, spk_ref, atol=1e-5, rtol=1e-5))
    assert bool(jnp.allclose(mem2_rec, mem_ref, atol=1e-5, rtol=1e-5))

    print("KERNEL_OK")
</pallas_src>

<mosaic_0001>
module attributes {stable_mosaic.version = 11 : i64} {
  func.func @snn_kernel(%arg0: memref<2x16xf32, #tpu.memory_space<vmem>>, %arg1: memref<16x32xf32, #tpu.memory_space<vmem>>, %arg2: memref<1x32xf32, #tpu.memory_space<vmem>>, %arg3: memref<32x8xf32, #tpu.memory_space<vmem>>, %arg4: memref<1x8xf32, #tpu.memory_space<vmem>>, %arg5: memref<8x16xf32, #tpu.memory_space<vmem>>, %arg6: memref<8x16xf32, #tpu.memory_space<vmem>>) attributes {dimension_semantics = [], scalar_prefetch = 0 : i64, scratch_operands = 0 : i64, tpu.core_type = #tpu.core_type<tc>} {
    %c0 = arith.constant 0 : index
    %c0_0 = arith.constant 0 : index
    %0 = vector.load %arg0[%c0, %c0_0] : memref<2x16xf32, #tpu.memory_space<vmem>>, vector<2x16xf32>
    %c0_1 = arith.constant 0 : index
    %c0_2 = arith.constant 0 : index
    %1 = vector.load %arg1[%c0_1, %c0_2] : memref<16x32xf32, #tpu.memory_space<vmem>>, vector<16x32xf32>
    %c0_3 = arith.constant 0 : index
    %c0_4 = arith.constant 0 : index
    %2 = vector.load %arg2[%c0_3, %c0_4] : memref<1x32xf32, #tpu.memory_space<vmem>>, vector<1x32xf32>
    %c0_5 = arith.constant 0 : index
    %c0_6 = arith.constant 0 : index
    %3 = vector.load %arg3[%c0_5, %c0_6] : memref<32x8xf32, #tpu.memory_space<vmem>>, vector<32x8xf32>
    %c0_7 = arith.constant 0 : index
    %c0_8 = arith.constant 0 : index
    %4 = vector.load %arg4[%c0_7, %c0_8] : memref<1x8xf32, #tpu.memory_space<vmem>>, vector<1x8xf32>
    %cst = arith.constant dense<0.000000e+00> : vector<2x32xf32>
    %5 = tpu.matmul %0, %1, %cst {dimension_numbers = #tpu.dot_dimension_numbers<[1], [0], [0], [1], [0, 0, 1, 1], [], []>} : vector<2x16xf32>, vector<16x32xf32>, vector<2x32xf32> -> vector<2x32xf32>
    %6 = vector.broadcast %2 : vector<1x32xf32> to vector<2x32xf32>
    %7 = arith.addf %5, %6 : vector<2x32xf32>
    %cst_9 = arith.constant 0.000000e+00 : f32
    %8 = vector.broadcast %cst_9 : f32 to vector<2x32xf32>
    %cst_10 = arith.constant 0.949999988 : f32
    %9 = vector.broadcast %cst_10 : f32 to vector<2x32xf32>
    %10 = arith.mulf %9, %8 : vector<2x32xf32>
    %11 = arith.addf %10, %7 : vector<2x32xf32>
    %cst_11 = arith.constant 1.000000e+00 : f32
    %12 = vector.broadcast %cst_11 : f32 to vector<2x32xf32>
    %13 = arith.cmpf ogt, %11, %12 : vector<2x32xf32>
    %14 = arith.extui %13 : vector<2x32xi1> to vector<2x32xi32>
    %15 = arith.sitofp %14 : vector<2x32xi32> to vector<2x32xf32>
    %cst_12 = arith.constant 1.000000e+00 : f32
    %16 = vector.broadcast %cst_12 : f32 to vector<2x32xf32>
    %17 = arith.subf %11, %16 : vector<2x32xf32>
    %18 = arith.select %13, %17, %11 : vector<2x32xi1>, vector<2x32xf32>
    %cst_13 = arith.constant 0.949999988 : f32
    %19 = vector.broadcast %cst_13 : f32 to vector<2x32xf32>
    %20 = arith.mulf %19, %18 : vector<2x32xf32>
    %21 = arith.addf %20, %7 : vector<2x32xf32>
    %cst_14 = arith.constant 1.000000e+00 : f32
    %22 = vector.broadcast %cst_14 : f32 to vector<2x32xf32>
    %23 = arith.cmpf ogt, %21, %22 : vector<2x32xf32>
    %24 = arith.extui %23 : vector<2x32xi1> to vector<2x32xi32>
    %25 = arith.sitofp %24 : vector<2x32xi32> to vector<2x32xf32>
    %cst_15 = arith.constant 1.000000e+00 : f32
    %26 = vector.broadcast %cst_15 : f32 to vector<2x32xf32>
    %27 = arith.subf %21, %26 : vector<2x32xf32>
    %28 = arith.select %23, %27, %21 : vector<2x32xi1>, vector<2x32xf32>
    %cst_16 = arith.constant 0.949999988 : f32
    %29 = vector.broadcast %cst_16 : f32 to vector<2x32xf32>
    %30 = arith.mulf %29, %28 : vector<2x32xf32>
    %31 = arith.addf %30, %7 : vector<2x32xf32>
    %cst_17 = arith.constant 1.000000e+00 : f32
    %32 = vector.broadcast %cst_17 : f32 to vector<2x32xf32>
    %33 = arith.cmpf ogt, %31, %32 : vector<2x32xf32>
    %34 = arith.extui %33 : vector<2x32xi1> to vector<2x32xi32>
    %35 = arith.sitofp %34 : vector<2x32xi32> to vector<2x32xf32>
    %cst_18 = arith.constant 1.000000e+00 : f32
    %36 = vector.broadcast %cst_18 : f32 to vector<2x32xf32>
    %37 = arith.subf %31, %36 : vector<2x32xf32>
    %38 = arith.select %33, %37, %31 : vector<2x32xi1>, vector<2x32xf32>
    %cst_19 = arith.constant 0.949999988 : f32
    %39 = vector.broadcast %cst_19 : f32 to vector<2x32xf32>
    %40 = arith.mulf %39, %38 : vector<2x32xf32>
    %41 = arith.addf %40, %7 : vector<2x32xf32>
    %cst_20 = arith.constant 1.000000e+00 : f32
    %42 = vector.broadcast %cst_20 : f32 to vector<2x32xf32>
    %43 = arith.cmpf ogt, %41, %42 : vector<2x32xf32>
    %44 = arith.extui %43 : vector<2x32xi1> to vector<2x32xi32>
    %45 = arith.sitofp %44 : vector<2x32xi32> to vector<2x32xf32>
    %cst_21 = arith.constant 1.000000e+00 : f32
    %46 = vector.broadcast %cst_21 : f32 to vector<2x32xf32>
    %47 = arith.subf %41, %46 : vector<2x32xf32>
    %48 = arith.select %43, %47, %41 : vector<2x32xi1>, vector<2x32xf32>
    %cst_22 = arith.constant 0.949999988 : f32
    %49 = vector.broadcast %cst_22 : f32 to vector<2x32xf32>
    %50 = arith.mulf %49, %48 : vector<2x32xf32>
    %51 = arith.addf %50, %7 : vector<2x32xf32>
    %cst_23 = arith.constant 1.000000e+00 : f32
    %52 = vector.broadcast %cst_23 : f32 to vector<2x32xf32>
    %53 = arith.cmpf ogt, %51, %52 : vector<2x32xf32>
    %54 = arith.extui %53 : vector<2x32xi1> to vector<2x32xi32>
    %55 = arith.sitofp %54 : vector<2x32xi32> to vector<2x32xf32>
    %cst_24 = arith.constant 1.000000e+00 : f32
    %56 = vector.broadcast %cst_24 : f32 to vector<2x32xf32>
    %57 = arith.subf %51, %56 : vector<2x32xf32>
    %58 = arith.select %53, %57, %51 : vector<2x32xi1>, vector<2x32xf32>
    %cst_25 = arith.constant 0.949999988 : f32
    %59 = vector.broadcast %cst_25 : f32 to vector<2x32xf32>
    %60 = arith.mulf %59, %58 : vector<2x32xf32>
    %61 = arith.addf %60, %7 : vector<2x32xf32>
    %cst_26 = arith.constant 1.000000e+00 : f32
    %62 = vector.broadcast %cst_26 : f32 to vector<2x32xf32>
    %63 = arith.cmpf ogt, %61, %62 : vector<2x32xf32>
    %64 = arith.extui %63 : vector<2x32xi1> to vector<2x32xi32>
    %65 = arith.sitofp %64 : vector<2x32xi32> to vector<2x32xf32>
    %cst_27 = arith.constant 1.000000e+00 : f32
    %66 = vector.broadcast %cst_27 : f32 to vector<2x32xf32>
    %67 = arith.subf %61, %66 : vector<2x32xf32>
    %68 = arith.select %63, %67, %61 : vector<2x32xi1>, vector<2x32xf32>
    %cst_28 = arith.constant 0.949999988 : f32
    %69 = vector.broadcast %cst_28 : f32 to vector<2x32xf32>
    %70 = arith.mulf %69, %68 : vector<2x32xf32>
    %71 = arith.addf %70, %7 : vector<2x32xf32>
    %cst_29 = arith.constant 1.000000e+00 : f32
    %72 = vector.broadcast %cst_29 : f32 to vector<2x32xf32>
    %73 = arith.cmpf ogt, %71, %72 : vector<2x32xf32>
    %74 = arith.extui %73 : vector<2x32xi1> to vector<2x32xi32>
    %75 = arith.sitofp %74 : vector<2x32xi32> to vector<2x32xf32>
    %cst_30 = arith.constant 1.000000e+00 : f32
    %76 = vector.broadcast %cst_30 : f32 to vector<2x32xf32>
    %77 = arith.subf %71, %76 : vector<2x32xf32>
    %78 = arith.select %73, %77, %71 : vector<2x32xi1>, vector<2x32xf32>
    %cst_31 = arith.constant 0.949999988 : f32
    %79 = vector.broadcast %cst_31 : f32 to vector<2x32xf32>
    %80 = arith.mulf %79, %78 : vector<2x32xf32>
    %81 = arith.addf %80, %7 : vector<2x32xf32>
    %cst_32 = arith.constant 1.000000e+00 : f32
    %82 = vector.broadcast %cst_32 : f32 to vector<2x32xf32>
    %83 = arith.cmpf ogt, %81, %82 : vector<2x32xf32>
    %84 = arith.extui %83 : vector<2x32xi1> to vector<2x32xi32>
    %85 = arith.sitofp %84 : vector<2x32xi32> to vector<2x32xf32>
    %86 = tpu.concatenate %15, %25, %35, %45, %55, %65, %75, %85 in 0 : vector<2x32xf32>, vector<2x32xf32>, vector<2x32xf32>, vector<2x32xf32>, vector<2x32xf32>, vector<2x32xf32>, vector<2x32xf32>, vector<2x32xf32> -> vector<16x32xf32>
    %cst_33 = arith.constant dense<0.000000e+00> : vector<16x8xf32>
    %87 = tpu.matmul %86, %3, %cst_33 {dimension_numbers = #tpu.dot_dimension_numbers<[1], [0], [0], [1], [0, 0, 1, 1], [], []>} : vector<16x32xf32>, vector<32x8xf32>, vector<16x8xf32> -> vector<16x8xf32>
    %88 = vector.broadcast %4 : vector<1x8xf32> to vector<16x8xf32>
    %89 = arith.addf %87, %88 : vector<16x8xf32>
    %90 = vector.extract_strided_slice %89 {offsets = [0, 0], sizes = [1, 8], strides = [1, 1]} : vector<16x8xf32> to vector<1x8xf32>
    %91 = vector.extract_strided_slice %89 {offsets = [1, 0], sizes = [1, 8], strides = [1, 1]} : vector<16x8xf32> to vector<1x8xf32>
    %92 = tpu.concatenate %90, %91 in 1 : vector<1x8xf32>, vector<1x8xf32> -> vector<1x16xf32>
    %93 = vector.extract_strided_slice %89 {offsets = [2, 0], sizes = [1, 8], strides = [1, 1]} : vector<16x8xf32> to vector<1x8xf32>
    %94 = vector.extract_strided_slice %89 {offsets = [3, 0], sizes = [1, 8], strides = [1, 1]} : vector<16x8xf32> to vector<1x8xf32>
    %95 = tpu.concatenate %93, %94 in 1 : vector<1x8xf32>, vector<1x8xf32> -> vector<1x16xf32>
    %96 = vector.extract_strided_slice %89 {offsets = [4, 0], sizes = [1, 8], strides = [1, 1]} : vector<16x8xf32> to vector<1x8xf32>
    %97 = vector.extract_strided_slice %89 {offsets = [5, 0], sizes = [1, 8], strides = [1, 1]} : vector<16x8xf32> to vector<1x8xf32>
    %98 = tpu.concatenate %96, %97 in 1 : vector<1x8xf32>, vector<1x8xf32> -> vector<1x16xf32>
    %99 = vector.extract_strided_slice %89 {offsets = [6, 0], sizes = [1, 8], strides = [1, 1]} : vector<16x8xf32> to vector<1x8xf32>
    %100 = vector.extract_strided_slice %89 {offsets = [7, 0], sizes = [1, 8], strides = [1, 1]} : vector<16x8xf32> to vector<1x8xf32>
    %101 = tpu.concatenate %99, %100 in 1 : vector<1x8xf32>, vector<1x8xf32> -> vector<1x16xf32>
    %102 = vector.extract_strided_slice %89 {offsets = [8, 0], sizes = [1, 8], strides = [1, 1]} : vector<16x8xf32> to vector<1x8xf32>
    %103 = vector.extract_strided_slice %89 {offsets = [9, 0], sizes = [1, 8], strides = [1, 1]} : vector<16x8xf32> to vector<1x8xf32>
    %104 = tpu.concatenate %102, %103 in 1 : vector<1x8xf32>, vector<1x8xf32> -> vector<1x16xf32>
    %105 = vector.extract_strided_slice %89 {offsets = [10, 0], sizes = [1, 8], strides = [1, 1]} : vector<16x8xf32> to vector<1x8xf32>
    %106 = vector.extract_strided_slice %89 {offsets = [11, 0], sizes = [1, 8], strides = [1, 1]} : vector<16x8xf32> to vector<1x8xf32>
    %107 = tpu.concatenate %105, %106 in 1 : vector<1x8xf32>, vector<1x8xf32> -> vector<1x16xf32>
    %108 = vector.extract_strided_slice %89 {offsets = [12, 0], sizes = [1, 8], strides = [1, 1]} : vector<16x8xf32> to vector<1x8xf32>
    %109 = vector.extract_strided_slice %89 {offsets = [13, 0], sizes = [1, 8], strides = [1, 1]} : vector<16x8xf32> to vector<1x8xf32>
    %110 = tpu.concatenate %108, %109 in 1 : vector<1x8xf32>, vector<1x8xf32> -> vector<1x16xf32>
    %111 = vector.extract_strided_slice %89 {offsets = [14, 0], sizes = [1, 8], strides = [1, 1]} : vector<16x8xf32> to vector<1x8xf32>
    %112 = vector.extract_strided_slice %89 {offsets = [15, 0], sizes = [1, 8], strides = [1, 1]} : vector<16x8xf32> to vector<1x8xf32>
    %113 = tpu.concatenate %111, %112 in 1 : vector<1x8xf32>, vector<1x8xf32> -> vector<1x16xf32>
    %cst_34 = arith.constant 0.000000e+00 : f32
    %114 = vector.broadcast %cst_34 : f32 to vector<1x16xf32>
    %cst_35 = arith.constant 0.949999988 : f32
    %115 = vector.broadcast %cst_35 : f32 to vector<1x16xf32>
    %116 = arith.mulf %115, %114 : vector<1x16xf32>
    %117 = arith.addf %116, %92 : vector<1x16xf32>
    %cst_36 = arith.constant 1.000000e+00 : f32
    %118 = vector.broadcast %cst_36 : f32 to vector<1x16xf32>
    %119 = arith.cmpf ogt, %117, %118 : vector<1x16xf32>
    %120 = arith.extui %119 : vector<1x16xi1> to vector<1x16xi32>
    %121 = arith.sitofp %120 : vector<1x16xi32> to vector<1x16xf32>
    %cst_37 = arith.constant 1.000000e+00 : f32
    %122 = vector.broadcast %cst_37 : f32 to vector<1x16xf32>
    %123 = arith.subf %117, %122 : vector<1x16xf32>
    %124 = arith.select %119, %123, %117 : vector<1x16xi1>, vector<1x16xf32>
    %cst_38 = arith.constant 0.949999988 : f32
    %125 = vector.broadcast %cst_38 : f32 to vector<1x16xf32>
    %126 = arith.mulf %125, %124 : vector<1x16xf32>
    %127 = arith.addf %126, %95 : vector<1x16xf32>
    %cst_39 = arith.constant 1.000000e+00 : f32
    %128 = vector.broadcast %cst_39 : f32 to vector<1x16xf32>
    %129 = arith.cmpf ogt, %127, %128 : vector<1x16xf32>
    %130 = arith.extui %129 : vector<1x16xi1> to vector<1x16xi32>
    %131 = arith.sitofp %130 : vector<1x16xi32> to vector<1x16xf32>
    %cst_40 = arith.constant 1.000000e+00 : f32
    %132 = vector.broadcast %cst_40 : f32 to vector<1x16xf32>
    %133 = arith.subf %127, %132 : vector<1x16xf32>
    %134 = arith.select %129, %133, %127 : vector<1x16xi1>, vector<1x16xf32>
    %cst_41 = arith.constant 0.949999988 : f32
    %135 = vector.broadcast %cst_41 : f32 to vector<1x16xf32>
    %136 = arith.mulf %135, %134 : vector<1x16xf32>
    %137 = arith.addf %136, %98 : vector<1x16xf32>
    %cst_42 = arith.constant 1.000000e+00 : f32
    %138 = vector.broadcast %cst_42 : f32 to vector<1x16xf32>
    %139 = arith.cmpf ogt, %137, %138 : vector<1x16xf32>
    %140 = arith.extui %139 : vector<1x16xi1> to vector<1x16xi32>
    %141 = arith.sitofp %140 : vector<1x16xi32> to vector<1x16xf32>
    %cst_43 = arith.constant 1.000000e+00 : f32
    %142 = vector.broadcast %cst_43 : f32 to vector<1x16xf32>
    %143 = arith.subf %137, %142 : vector<1x16xf32>
    %144 = arith.select %139, %143, %137 : vector<1x16xi1>, vector<1x16xf32>
    %cst_44 = arith.constant 0.949999988 : f32
    %145 = vector.broadcast %cst_44 : f32 to vector<1x16xf32>
    %146 = arith.mulf %145, %144 : vector<1x16xf32>
    %147 = arith.addf %146, %101 : vector<1x16xf32>
    %cst_45 = arith.constant 1.000000e+00 : f32
    %148 = vector.broadcast %cst_45 : f32 to vector<1x16xf32>
    %149 = arith.cmpf ogt, %147, %148 : vector<1x16xf32>
    %150 = arith.extui %149 : vector<1x16xi1> to vector<1x16xi32>
    %151 = arith.sitofp %150 : vector<1x16xi32> to vector<1x16xf32>
    %cst_46 = arith.constant 1.000000e+00 : f32
    %152 = vector.broadcast %cst_46 : f32 to vector<1x16xf32>
    %153 = arith.subf %147, %152 : vector<1x16xf32>
    %154 = arith.select %149, %153, %147 : vector<1x16xi1>, vector<1x16xf32>
    %cst_47 = arith.constant 0.949999988 : f32
    %155 = vector.broadcast %cst_47 : f32 to vector<1x16xf32>
    %156 = arith.mulf %155, %154 : vector<1x16xf32>
    %157 = arith.addf %156, %104 : vector<1x16xf32>
    %cst_48 = arith.constant 1.000000e+00 : f32
    %158 = vector.broadcast %cst_48 : f32 to vector<1x16xf32>
    %159 = arith.cmpf ogt, %157, %158 : vector<1x16xf32>
    %160 = arith.extui %159 : vector<1x16xi1> to vector<1x16xi32>
    %161 = arith.sitofp %160 : vector<1x16xi32> to vector<1x16xf32>
    %cst_49 = arith.constant 1.000000e+00 : f32
    %162 = vector.broadcast %cst_49 : f32 to vector<1x16xf32>
    %163 = arith.subf %157, %162 : vector<1x16xf32>
    %164 = arith.select %159, %163, %157 : vector<1x16xi1>, vector<1x16xf32>
    %cst_50 = arith.constant 0.949999988 : f32
    %165 = vector.broadcast %cst_50 : f32 to vector<1x16xf32>
    %166 = arith.mulf %165, %164 : vector<1x16xf32>
    %167 = arith.addf %166, %107 : vector<1x16xf32>
    %cst_51 = arith.constant 1.000000e+00 : f32
    %168 = vector.broadcast %cst_51 : f32 to vector<1x16xf32>
    %169 = arith.cmpf ogt, %167, %168 : vector<1x16xf32>
    %170 = arith.extui %169 : vector<1x16xi1> to vector<1x16xi32>
    %171 = arith.sitofp %170 : vector<1x16xi32> to vector<1x16xf32>
    %cst_52 = arith.constant 1.000000e+00 : f32
    %172 = vector.broadcast %cst_52 : f32 to vector<1x16xf32>
    %173 = arith.subf %167, %172 : vector<1x16xf32>
    %174 = arith.select %169, %173, %167 : vector<1x16xi1>, vector<1x16xf32>
    %cst_53 = arith.constant 0.949999988 : f32
    %175 = vector.broadcast %cst_53 : f32 to vector<1x16xf32>
    %176 = arith.mulf %175, %174 : vector<1x16xf32>
    %177 = arith.addf %176, %110 : vector<1x16xf32>
    %cst_54 = arith.constant 1.000000e+00 : f32
    %178 = vector.broadcast %cst_54 : f32 to vector<1x16xf32>
    %179 = arith.cmpf ogt, %177, %178 : vector<1x16xf32>
    %180 = arith.extui %179 : vector<1x16xi1> to vector<1x16xi32>
    %181 = arith.sitofp %180 : vector<1x16xi32> to vector<1x16xf32>
    %cst_55 = arith.constant 1.000000e+00 : f32
    %182 = vector.broadcast %cst_55 : f32 to vector<1x16xf32>
    %183 = arith.subf %177, %182 : vector<1x16xf32>
    %184 = arith.select %179, %183, %177 : vector<1x16xi1>, vector<1x16xf32>
    %cst_56 = arith.constant 0.949999988 : f32
    %185 = vector.broadcast %cst_56 : f32 to vector<1x16xf32>
    %186 = arith.mulf %185, %184 : vector<1x16xf32>
    %187 = arith.addf %186, %113 : vector<1x16xf32>
    %cst_57 = arith.constant 1.000000e+00 : f32
    %188 = vector.broadcast %cst_57 : f32 to vector<1x16xf32>
    %189 = arith.cmpf ogt, %187, %188 : vector<1x16xf32>
    %190 = arith.extui %189 : vector<1x16xi1> to vector<1x16xi32>
    %191 = arith.sitofp %190 : vector<1x16xi32> to vector<1x16xf32>
    %cst_58 = arith.constant 1.000000e+00 : f32
    %192 = vector.broadcast %cst_58 : f32 to vector<1x16xf32>
    %193 = arith.subf %187, %192 : vector<1x16xf32>
    %194 = arith.select %189, %193, %187 : vector<1x16xi1>, vector<1x16xf32>
    %195 = tpu.concatenate %121, %131, %141, %151, %161, %171, %181, %191 in 0 : vector<1x16xf32>, vector<1x16xf32>, vector<1x16xf32>, vector<1x16xf32>, vector<1x16xf32>, vector<1x16xf32>, vector<1x16xf32>, vector<1x16xf32> -> vector<8x16xf32>
    %c0_59 = arith.constant 0 : index
    %c0_60 = arith.constant 0 : index
    %196 = vector.load %arg5[%c0_59, %c0_60] : memref<8x16xf32, #tpu.memory_space<vmem>>, vector<8x16xf32>
    tpu.vector_store %arg5[%c0_59, %c0_60], %195 {strides = array<i32>} : memref<8x16xf32, #tpu.memory_space<vmem>>, vector<8x16xf32>,
    %197 = tpu.concatenate %124, %134, %144, %154, %164, %174, %184, %194 in 0 : vector<1x16xf32>, vector<1x16xf32>, vector<1x16xf32>, vector<1x16xf32>, vector<1x16xf32>, vector<1x16xf32>, vector<1x16xf32>, vector<1x16xf32> -> vector<8x16xf32>
    %c0_61 = arith.constant 0 : index
    %c0_62 = arith.constant 0 : index
    %198 = vector.load %arg6[%c0_61, %c0_62] : memref<8x16xf32, #tpu.memory_space<vmem>>, vector<8x16xf32>
    tpu.vector_store %arg6[%c0_61, %c0_62], %197 {strides = array<i32>} : memref<8x16xf32, #tpu.memory_space<vmem>>, vector<8x16xf32>,
    return
  }
}

</mosaic_0001>

<llo_original>
// kernel: tpu_custom_call.1
$region0: #{tpu_custom_call.1}
  #allocation0 [shape = 'u32[]', space=smem, size = 0x4, offset = 0x4, fixed_abs, tag = 'smem constant byte address 0x4 - core index']
  #allocation1 [shape = 'u32[144,128]{1,0:T(1,128)}', space=vmem, size = 0x12000, scoped, tag = 'internal scratch']
  %s0 = inlined_call_operand.vmem [shape: f32[2,16], index: 0, kind: input, shape index: {}]
  %s1 = inlined_call_operand.vmem [shape: f32[16,32], index: 1, kind: input, shape index: {}]
  %s2 = inlined_call_operand.vmem [shape: f32[1,32], index: 2, kind: input, shape index: {}]
  %s3 = inlined_call_operand.vmem [shape: f32[32,8], index: 3, kind: input, shape index: {}]
  %s4 = inlined_call_operand.vmem [shape: f32[1,8], index: 4, kind: input, shape index: {}]
  %s5 = inlined_call_operand.hbm [shape: f32[8,16], index: 5, kind: output, shape index: {0}]
  %s6 = inlined_call_operand.hbm [shape: f32[8,16], index: 6, kind: output, shape index: {1}]
  %7 = xla_tuple %s5, %s6
  %s8 = sld [smem:[#allocation0]]
  $region38: #{tpu_custom_call.1} parent=0
    _
  %s10 = ssub.s32 1, %s8
  %s11 = scalar_select 0, %s10, %s8
  $region1: #{tpu_custom_call.1} parent=0
    #allocation2 [shape = 'u8[4096]{0}', space=vmem, size = 0x1000, scoped, tag = 'output window, operand 0, single buffered']
    #allocation3 [shape = 's32[1]{0}', space=sflag, size = 0x4, scoped, tag = 'scoped memory for tpu_custom_call.1']
    #allocation4 [shape = 'u8[4096]{0}', space=vmem, size = 0x1000, scoped, tag = 'output window, operand 1, single buffered']
    #allocation5 [shape = 's32[1]{0}', space=sflag, size = 0x4, scoped, tag = 'scoped memory for tpu_custom_call.1']
    %12 = vsyncpa [#allocation3], 0
    %13 = vsyncpa [#allocation5], 0
    // Predicated region
    $region2: #{tpu_custom_call.1} parent=1 // pred_check
      _
    $region3: #{tpu_custom_call.1} parent=1 // pred_check_branch
      %15 = sbr.rel (0) target = $region5
    $region4: #{tpu_custom_call.1} parent=1 // pred_region
      _
    $region5: #{tpu_custom_call.1} parent=1 // pred_fallthru
      _
    // Predicated region
    $region6: #{tpu_custom_call.1} parent=1 // pred_check
      _
    $region7: #{tpu_custom_call.1} parent=1 // pred_check_branch
      %17 = sbr.rel (0) target = $region9
    $region8: #{tpu_custom_call.1} parent=1 // pred_region
      _
    $region9: #{tpu_custom_call.1} parent=1 // pred_fallthru
      _
    // Predicated region
    $region10: #{tpu_custom_call.1} parent=1 // pred_check
      _
    $region11: #{tpu_custom_call.1} parent=1 // pred_check_branch
      %19 = sbr.rel (0) target = $region13
    $region12: #{tpu_custom_call.1} parent=1 // pred_region
      _
    $region13: #{tpu_custom_call.1} parent=1 // pred_fallthru
      _
    // Predicated region
    $region14: #{tpu_custom_call.1} parent=1 // pred_check
      _
    $region15: #{tpu_custom_call.1} parent=1 // pred_check_branch
      %21 = sbr.rel (0) target = $region17
    $region16: #{tpu_custom_call.1} parent=1 // pred_region
      _
    $region17: #{tpu_custom_call.1} parent=1 // pred_fallthru
      _
    // Predicated region
    $region18: #{tpu_custom_call.1} parent=1 // pred_check
      _
    $region19: #{tpu_custom_call.1} parent=1 // pred_check_branch
      %23 = sbr.rel (0) target = $region21
    $region20: #{tpu_custom_call.1} parent=1 // pred_region
      _
    $region21: #{tpu_custom_call.1} parent=1 // pred_fallthru
      _
    %v24 = vld [vmem:[%s0] sm:$0x3]
    %v25 = vld [vmem:[%s1] sm:$0xff]
    %v26 = vld [vmem:[%s1 + $0x8] sm:$0xff]
    %v27 = vld [vmem:[%s2] sm:$0x1]
    %v28 = vld [vmem:[%s3] sm:$0xff]
    %v29 = vld [vmem:[%s3 + $0x8] sm:$0xff]
    %v30 = vld [vmem:[%s3 + $0x10] sm:$0xff]
    %v31 = vld [vmem:[%s3 + $0x18] sm:$0xff]
    %v32 = vld [vmem:[%s4] sm:$0x1]
    %v34 = vlaneseq
    %v35 = vshrl.u32 %v34, 7
    %v36 = vsub.s32 0, %v35
    %v37 = vrot.slane %v27, %v36
    %vm39 = vcmask 130048
    %v41 = vsel %vm39, %v24, 0
    %43 = vmatprep.subr.mxu0 0.0
    %44 = vmatpush1.msra.mxu0 %v25
    %45 = vmatprep.subr.mxu0 0.0
    %46 = vmatpush1.msra.mxu0 %v26
    %47 = vmatprep.subr.mxu0 0.0
    %48 = vmatpush1.msra.mxu0 0.0
    %49 = vmatprep.subr.mxu0 0.0
    %50 = vmatpush1.msra.mxu0 0.0
    %51 = vmatprep.subr.mxu0 0.0
    %52 = vmatpush1.msra.mxu0 0.0
    %53 = vmatprep.subr.mxu0 0.0
    %54 = vmatpush1.msra.mxu0 0.0
    %55 = vmatprep.subr.mxu0 0.0
    %56 = vmatpush1.msra.mxu0 0.0
    %57 = vmatprep.subr.mxu0 0.0
    %58 = vmatpush1.msra.mxu0 0.0
    %59 = vmatprep.subr.mxu0 0.0
    %60 = vmatpush1.msra.mxu0 0.0
    %61 = vmatprep.subr.mxu0 0.0
    %62 = vmatpush1.msra.mxu0 0.0
    %63 = vmatprep.subr.mxu0 0.0
    %64 = vmatpush1.msra.mxu0 0.0
    %65 = vmatprep.subr.mxu0 0.0
    %66 = vmatpush1.msra.mxu0 0.0
    %67 = vmatprep.subr.mxu0 0.0
    %68 = vmatpush1.msra.mxu0 0.0
    %69 = vmatprep.subr.mxu0 0.0
    %70 = vmatpush1.msra.mxu0 0.0
    %71 = vmatprep.subr.mxu0 0.0
    %72 = vmatpush1.msra.mxu0 0.0
    %73 = vmatprep.subr.mxu0 0.0
    %74 = vmatpush1.msra.mxu0 0.0
    %75 = vmatprep.subr.mxu0 0.0
    %76 = vmatpush1.msra.mxu0 0.0
    %77 = vmatprep.subr.mxu0 0.0
    %78 = vmatpush1.msra.mxu0 0.0
    %79 = vmatprep.subr.mxu0 0.0
    %80 = vmatpush1.msra.mxu0 0.0
    %81 = vmatprep.subr.mxu0 0.0
    %82 = vmatpush1.msra.mxu0 0.0
    %83 = vmatprep.subr.mxu0 0.0
    %84 = vmatpush1.msra.mxu0 0.0
    %85 = vmatprep.subr.mxu0 0.0
    %86 = vmatpush1.msra.mxu0 0.0
    %87 = vmatprep.subr.mxu0 0.0
    %88 = vmatpush1.msra.mxu0 0.0
    %89 = vmatprep.subr.mxu0 0.0
    %90 = vmatpush1.msra.mxu0 0.0
    %91 = vmatprep.subr.mxu0 0.0
    %92 = vmatpush1.msra.mxu0 0.0
    %93 = vmatprep.subr.mxu0 0.0
    %94 = vmatpush1.msra.mxu0 0.0
    %95 = vmatprep.subr.mxu0 0.0
    %96 = vmatpush1.msra.mxu0 0.0
    %97 = vmatprep.subr.mxu0 0.0
    %98 = vmatpush1.msra.mxu0 0.0
    %99 = vmatprep.subr.mxu0 0.0
    %100 = vmatpush1.msra.mxu0 0.0
    %101 = vmatprep.subr.mxu0 0.0
    %102 = vmatpush1.msra.mxu0 0.0
    %103 = vmatprep.subr.mxu0 0.0
    %104 = vmatpush1.msra.mxu0 0.0
    %105 = vmatprep.subr.mxu0 0.0
    %106 = vmatpush1.msra.mxu0 0.0
    %107 = vmatprep.mubr.f32.mxu0 0.0
    %108 = vmatmul.mubr.f32.gmra.mrb[0].mxu0 %v41
    %v109 = vpop.f32.mrb[0].mxu0
    %v110 = vadd.f32 %v37, %v109
    %v111 = vpop.f32.mrb[0].mxu0
    %112 = vdwg.mxu0
    %v113 = vadd.f32 %v110, 0.0
    %vm114 = vcmp.gt.f32.partialorder %v113, 1.0
    %v115 = vsel %vm114, 1, 0
    %v116 = vcvt.s32.f32 %v115
    %v117 = vsub.f32 %v113, 1.0
    %v118 = vsel %vm114, %v117, %v113
    %v119 = vmul.f32 %v118, 0.95
    %v120 = vadd.f32 %v119, %v110
    %vm121 = vcmp.gt.f32.partialorder %v120, 1.0
    %v122 = vsel %vm121, 1, 0
    %v123 = vcvt.s32.f32 %v122
    %v124 = vsub.f32 %v120, 1.0
    %v125 = vsel %vm121, %v124, %v120
    %v126 = vmul.f32 %v125, 0.95
    %v127 = vadd.f32 %v126, %v110
    %vm128 = vcmp.gt.f32.partialorder %v127, 1.0
    %v129 = vsel %vm128, 1, 0
    %v130 = vcvt.s32.f32 %v129
    %v131 = vsub.f32 %v127, 1.0
    %v132 = vsel %vm128, %v131, %v127
    %v133 = vmul.f32 %v132, 0.95
    %v134 = vadd.f32 %v133, %v110
    %vm135 = vcmp.gt.f32.partialorder %v134, 1.0
    %v136 = vsel %vm135, 1, 0
    %v137 = vcvt.s32.f32 %v136
    %v138 = vsub.f32 %v134, 1.0
    %v139 = vsel %vm135, %v138, %v134
    %v140 = vmul.f32 %v139, 0.95
    %v141 = vadd.f32 %v140, %v110
    %vm142 = vcmp.gt.f32.partialorder %v141, 1.0
    %v143 = vsel %vm142, 1, 0
    %v144 = vcvt.s32.f32 %v143
    %v145 = vsub.f32 %v141, 1.0
    %v146 = vsel %vm142, %v145, %v141
    %v147 = vmul.f32 %v146, 0.95
    %v148 = vadd.f32 %v147, %v110
    %vm149 = vcmp.gt.f32.partialorder %v148, 1.0
    %v150 = vsel %vm149, 1, 0
    %v151 = vcvt.s32.f32 %v150
    %v152 = vsub.f32 %v148, 1.0
    %v153 = vsel %vm149, %v152, %v148
    %v154 = vmul.f32 %v153, 0.95
    %v155 = vadd.f32 %v154, %v110
    %vm156 = vcmp.gt.f32.partialorder %v155, 1.0
    %v157 = vsel %vm156, 1, 0
    %v158 = vcvt.s32.f32 %v157
    %v159 = vsub.f32 %v155, 1.0
    %v160 = vsel %vm156, %v159, %v155
    %v161 = vmul.f32 %v160, 0.95
    %v162 = vadd.f32 %v161, %v110
    %vm163 = vcmp.gt.f32.partialorder %v162, 1.0
    %v164 = vsel %vm163, 1, 0
    %v165 = vcvt.s32.f32 %v164
    %v167 = vrot.slane %v123, 6
    %v170 = vrot.slane %v130, 4
    %v173 = vrot.slane %v137, 2
    %v176 = vrot.slane %v151, 6
    %v179 = vrot.slane %v158, 4
    %v182 = vrot.slane %v165, 2
    %vm184 = vcmask 1041408
    %v185 = vsel %vm184, %v116, %v167
    %vm186 = vcmask 1043456
    %v187 = vsel %vm186, %v185, %v170
    %vm188 = vcmask 1045504
    %v189 = vsel %vm188, %v187, %v173
    %v190 = vsel %vm184, %v144, %v176
    %v191 = vsel %vm186, %v190, %v179
    %v192 = vsel %vm188, %v191, %v182
    %v194 = vlaneseq
    %v195 = vshrl.u32 %v194, 7
    %v196 = vsub.s32 0, %v195
    %v197 = vrot.slane %v32, %v196
    %vm199 = vcmask 261120
    %v201 = vsel %vm199, %v189, 0
    %v204 = vsel %vm199, %v192, 0
    %206 = vmatprep.subr.mxu0 0.0
    %207 = vmatpush1.msra.mxu0 %v28
    %208 = vmatprep.subr.mxu0 0.0
    %209 = vmatpush1.msra.mxu0 %v29
    %210 = vmatprep.subr.mxu0 0.0
    %211 = vmatpush1.msra.mxu0 %v30
    %212 = vmatprep.subr.mxu0 0.0
    %213 = vmatpush1.msra.mxu0 %v31
    %214 = vmatprep.subr.mxu0 0.0
    %215 = vmatpush1.msra.mxu0 0.0
    %216 = vmatprep.subr.mxu0 0.0
    %217 = vmatpush1.msra.mxu0 0.0
    %218 = vmatprep.subr.mxu0 0.0
    %219 = vmatpush1.msra.mxu0 0.0
    %220 = vmatprep.subr.mxu0 0.0
    %221 = vmatpush1.msra.mxu0 0.0
    %222 = vmatprep.subr.mxu0 0.0
    %223 = vmatpush1.msra.mxu0 0.0
    %224 = vmatprep.subr.mxu0 0.0
    %225 = vmatpush1.msra.mxu0 0.0
    %226 = vmatprep.subr.mxu0 0.0
    %227 = vmatpush1.msra.mxu0 0.0
    %228 = vmatprep.subr.mxu0 0.0
    %229 = vmatpush1.msra.mxu0 0.0
    %230 = vmatprep.subr.mxu0 0.0
    %231 = vmatpush1.msra.mxu0 0.0
    %232 = vmatprep.subr.mxu0 0.0
    %233 = vmatpush1.msra.mxu0 0.0
    %234 = vmatprep.subr.mxu0 0.0
    %235 = vmatpush1.msra.mxu0 0.0
    %236 = vmatprep.subr.mxu0 0.0
    %237 = vmatpush1.msra.mxu0 0.0
    %238 = vmatprep.subr.mxu0 0.0
    %239 = vmatpush1.msra.mxu0 0.0
    %240 = vmatprep.subr.mxu0 0.0
    %241 = vmatpush1.msra.mxu0 0.0
    %242 = vmatprep.subr.mxu0 0.0
    %243 = vmatpush1.msra.mxu0 0.0
    %244 = vmatprep.subr.mxu0 0.0
    %245 = vmatpush1.msra.mxu0 0.0
    %246 = vmatprep.subr.mxu0 0.0
    %247 = vmatpush1.msra.mxu0 0.0
    %248 = vmatprep.subr.mxu0 0.0
    %249 = vmatpush1.msra.mxu0 0.0
    %250 = vmatprep.subr.mxu0 0.0
    %251 = vmatpush1.msra.mxu0 0.0
    %252 = vmatprep.subr.mxu0 0.0
    %253 = vmatpush1.msra.mxu0 0.0
    %254 = vmatprep.subr.mxu0 0.0
    %255 = vmatpush1.msra.mxu0 0.0
    %256 = vmatprep.subr.mxu0 0.0
    %257 = vmatpush1.msra.mxu0 0.0
    %258 = vmatprep.subr.mxu0 0.0
    %259 = vmatpush1.msra.mxu0 0.0
    %260 = vmatprep.subr.mxu0 0.0
    %261 = vmatpush1.msra.mxu0 0.0
    %262 = vmatprep.subr.mxu0 0.0
    %263 = vmatpush1.msra.mxu0 0.0
    %264 = vmatprep.subr.mxu0 0.0
    %265 = vmatpush1.msra.mxu0 0.0
    %266 = vmatprep.subr.mxu0 0.0
    %267 = vmatpush1.msra.mxu0 0.0
    %268 = vmatprep.subr.mxu0 0.0
    %269 = vmatpush1.msra.mxu0 0.0
    %270 = vmatprep.mubr.f32.mxu0 0.0
    %271 = vmatmul.mubr.f32.gmra.mrb[0].mxu0 %v201
    %v272 = vpop.f32.mrb[0].mxu0
    %v273 = vadd.f32 %v197, %v272
    %v274 = vpop.f32.mrb[0].mxu0
    %275 = vmatprep.mubr.f32.mxu0 0.0
    %276 = vmatmul.mubr.f32.gmra.mrb[0].mxu0 %v204
    %v277 = vpop.f32.mrb[0].mxu0
    %v278 = vadd.f32 %v197, %v277
    %v279 = vpop.f32.mrb[0].mxu0
    %280 = vdwg.mxu0
    %v282 = vrot.slane %v273, 1
    %283 = vrot.lane.b32.xlu0 %v282, 8
    %v284 = vpop.permute.xlu0 %283
    %vm286 = vcmask 64512
    %v287 = vsel %vm286, %v273, %v284
    %v289 = vrot.slane %v278, 1
    %290 = vrot.lane.b32.xlu0 %v289, 8
    %v291 = vpop.permute.xlu0 %290
    %v293 = vsel %vm286, %v278, %v291
    %v294 = vadd.f32 %v287, 0.0
    %vm295 = vcmp.gt.f32.partialorder %v294, 1.0
    %v296 = vsel %vm295, 1, 0
    %v297 = vcvt.s32.f32 %v296
    %v298 = vsub.f32 %v294, 1.0
    %v299 = vsel %vm295, %v298, %v294
    %v300 = vmul.f32 %v299, 0.95
    %v302 = vrot.slane %v287, 2
    %v304 = vadd.f32 %v300, %v302
    %vm305 = vcmp.gt.f32.partialorder %v304, 1.0
    %v306 = vsel %vm305, 1, 0
    %v307 = vcvt.s32.f32 %v306
    %v308 = vsub.f32 %v304, 1.0
    %v309 = vsel %vm305, %v308, %v304
    %v310 = vmul.f32 %v309, 0.95
    %v311 = vrot.slane %v287, 4
    %v313 = vadd.f32 %v310, %v311
    %vm314 = vcmp.gt.f32.partialorder %v313, 1.0
    %v315 = vsel %vm314, 1, 0
    %v316 = vcvt.s32.f32 %v315
    %v317 = vsub.f32 %v313, 1.0
    %v318 = vsel %vm314, %v317, %v313
    %v319 = vmul.f32 %v318, 0.95
    %v320 = vrot.slane %v287, 6
    %v322 = vadd.f32 %v319, %v320
    %vm323 = vcmp.gt.f32.partialorder %v322, 1.0
    %v324 = vsel %vm323, 1, 0
    %v325 = vcvt.s32.f32 %v324
    %v326 = vsub.f32 %v322, 1.0
    %v327 = vsel %vm323, %v326, %v322
    %v328 = vmul.f32 %v327, 0.95
    %v329 = vadd.f32 %v328, %v293
    %vm330 = vcmp.gt.f32.partialorder %v329, 1.0
    %v331 = vsel %vm330, 1, 0
    %v332 = vcvt.s32.f32 %v331
    %v333 = vsub.f32 %v329, 1.0
    %v334 = vsel %vm330, %v333, %v329
    %v335 = vmul.f32 %v334, 0.95
    %v337 = vrot.slane %v293, 2
    %v339 = vadd.f32 %v335, %v337
    %vm340 = vcmp.gt.f32.partialorder %v339, 1.0
    %v341 = vsel %vm340, 1, 0
    %v342 = vcvt.s32.f32 %v341
    %v343 = vsub.f32 %v339, 1.0
    %v344 = vsel %vm340, %v343, %v339
    %v345 = vmul.f32 %v344, 0.95
    %v346 = vrot.slane %v293, 4
    %v348 = vadd.f32 %v345, %v346
    %vm349 = vcmp.gt.f32.partialorder %v348, 1.0
    %v350 = vsel %vm349, 1, 0
    %v351 = vcvt.s32.f32 %v350
    %v352 = vsub.f32 %v348, 1.0
    %v353 = vsel %vm349, %v352, %v348
    %v354 = vmul.f32 %v353, 0.95
    %v355 = vrot.slane %v293, 6
    %v357 = vadd.f32 %v354, %v355
    %vm358 = vcmp.gt.f32.partialorder %v357, 1.0
    %v359 = vsel %vm358, 1, 0
    %v360 = vcvt.s32.f32 %v359
    %v361 = vsub.f32 %v357, 1.0
    %v362 = vsel %vm358, %v361, %v357
    %v364 = vrot.slane %v307, 7
    %v367 = vrot.slane %v316, 6
    %v370 = vrot.slane %v325, 5
    %v373 = vrot.slane %v332, 4
    %v376 = vrot.slane %v342, 3
    %v379 = vrot.slane %v351, 2
    %v382 = vrot.slane %v360, 1
    %vm384 = vcmask 1040384
    %v385 = vsel %vm384, %v297, %v364
    %v386 = vsel %vm184, %v385, %v367
    %vm387 = vcmask 1042432
    %v388 = vsel %vm387, %v386, %v370
    %v389 = vsel %vm186, %v388, %v373
    %vm390 = vcmask 1044480
    %v391 = vsel %vm390, %v389, %v376
    %v392 = vsel %vm188, %v391, %v379
    %vm393 = vcmask 1046528
    %v394 = vsel %vm393, %v392, %v382
    %395 = vst.msk [vmem:[#allocation2] sm:$0xff] %vm39, %v394
    %v397 = vrot.slane %v309, 7
    %v400 = vrot.slane %v318, 6
    %v403 = vrot.slane %v327, 5
    %v406 = vrot.slane %v334, 4
    %v409 = vrot.slane %v344, 3
    %v412 = vrot.slane %v353, 2
    %v415 = vrot.slane %v362, 1
    %v417 = vsel %vm384, %v299, %v397
    %v418 = vsel %vm184, %v417, %v400
    %v419 = vsel %vm387, %v418, %v403
    %v420 = vsel %vm186, %v419, %v406
    %v421 = vsel %vm390, %v420, %v409
    %v422 = vsel %vm188, %v421, %v412
    %v423 = vsel %vm393, %v422, %v415
    %424 = vst.msk [vmem:[#allocation4] sm:$0xff] %vm39, %v423
    // Predicated region
    $region22: #{tpu_custom_call.1} parent=1 // pred_check
      _
    $region23: #{tpu_custom_call.1} parent=1 // pred_check_branch
      %426 = sbr.rel (0) target = $region25
    $region24: #{tpu_custom_call.1} parent=1 // pred_region
      %s428 = ssub.s32 128, 128
      %429 = vsyncadd [#allocation3], %s428
      %s431 = sshll.u32 [#allocation2], 4
      %s432 = int_to_ptr.vmem [resolvable:$true] %s431
      %434 = dma.vmem_to_hbm [thread:$0]  %s432, 128, %s5, [#allocation3]
    $region25: #{tpu_custom_call.1} parent=1 // pred_fallthru
      _
    // Predicated region
    $region26: #{tpu_custom_call.1} parent=1 // pred_check
      _
    $region27: #{tpu_custom_call.1} parent=1 // pred_check_branch
      %436 = sbr.rel (0) target = $region29
    $region28: #{tpu_custom_call.1} parent=1 // pred_region
      %s438 = ssub.s32 128, 128
      %439 = vsyncadd [#allocation5], %s438
      %s441 = sshll.u32 [#allocation4], 4
      %s442 = int_to_ptr.vmem [resolvable:$true] %s441
      %444 = dma.vmem_to_hbm [thread:$0]  %s442, 128, %s6, [#allocation5]
    $region29: #{tpu_custom_call.1} parent=1 // pred_fallthru
      _
    // Predicated region
    $region30: #{tpu_custom_call.1} parent=1 // pred_check
      _
    $region31: #{tpu_custom_call.1} parent=1 // pred_check_branch
      %446 = sbr.rel (0) target = $region33
    $region32: #{tpu_custom_call.1} parent=1 // pred_region
      %447 = dma.done [#allocation3], 128
    $region33: #{tpu_custom_call.1} parent=1 // pred_fallthru
      _
    // Predicated region
    $region34: #{tpu_custom_call.1} parent=1 // pred_check
      _
    $region35: #{tpu_custom_call.1} parent=1 // pred_check_branch
      %449 = sbr.rel (0) target = $region37
    $region36: #{tpu_custom_call.1} parent=1 // pred_region
      %450 = dma.done [#allocation5], 128
    $region37: #{tpu_custom_call.1} parent=1 // pred_fallthru
      _
    %451 = vsyncpa [#allocation3], 1
    %452 = vsyncpa [#allocation5], 1

</llo_original>
